<compile_context>
chip_gen: v7x
topology: tpu7x:2x2x1
jax: 0.10.0
libtpu: 0.0.40
codegen_flags: <defaults>
</compile_context>

<pallas_src>
import jax
import jax.numpy as jnp
from jax.experimental import pallas as pl
from jax.experimental.pallas import tpu as pltpu


def _round_up(x, m):
    return ((x + m - 1) // m) * m


def i2i_score_kernel(src_ref, dst_ref, a_ref, b_ref, out_ref):
    # src_ref / dst_ref : [1, TE]        int32 edge-endpoint node ids
    # a_ref / b_ref     : [2R, N_pad]    bf16 resident tables (rows 0..R-1 = hi
    #                                    piece, rows R..2R-1 = lo piece) holding
    #                                    [h.T ; 1 ; bias] / [h.T ; bias ; 1]
    # out_ref           : [1, TE]        f32 pair scores (lane-dense store)
    n_pad = a_ref.shape[1]
    te = src_ref.shape[1]
    r = a_ref.shape[0] // 2

    # One-hot gather matrices, built on the VPU: oh[n, e] = (n == idx[e]).
    node_ids = jax.lax.broadcasted_iota(jnp.int32, (n_pad, te), 0)
    oh_src = jnp.where(node_ids == src_ref[...], 1.0, 0.0).astype(jnp.bfloat16)
    oh_dst = jnp.where(node_ids == dst_ref[...], 1.0, 0.0).astype(jnp.bfloat16)

    # Row gather on the (otherwise idle) MXU, f32 accumulation.
    ga = jnp.dot(a_ref[...], oh_src, preferred_element_type=jnp.float32)  # [2R, TE]
    gb = jnp.dot(b_ref[...], oh_dst, preferred_element_type=jnp.float32)  # [2R, TE]

    # Recombine the (hi, lo) bf16 split -> near-f32 gathered features.
    hs = ga[:r, :] + ga[r:, :]                      # [R, TE]
    hd = gb[:r, :] + gb[r:, :]                      # [R, TE]

    # VPU elementwise multiply + XLU cross-sublane reduce; bias rows are already
    # folded into the tables, so this single reduce yields the final score.
    out_ref[...] = jnp.sum(hs * hd, axis=0, keepdims=True)


def item_to_item_score(h, src, dst, nid, bias, *, edge_tile=2048):
    """pair_score[e] = <h[src[e]], h[dst[e]]> + bias[nid[src[e]]] + bias[nid[dst[e]]]."""
    num_edges = src.shape[0]
    num_nodes, d = h.shape
    f32 = jnp.float32

    # ---- wrapper glue (tiny, O(N*D)): build the resident node table ----------
    h = h.astype(f32)
    bias_sub = jnp.take(bias.astype(f32), nid)                 # [N] deduped bias gather
    ones = jnp.ones((1, num_nodes), f32)
    ht = h.T                                                    # [D, N]
    # Augment with two rows so bias folds into the dot:
    #   src operand rows: [h.T ; 1        ; bias_sub]
    #   dst operand rows: [h.T ; bias_sub ; 1       ]
    a_f32 = jnp.concatenate([ht, ones, bias_sub[None, :]], axis=0)   # [D+2, N]
    b_f32 = jnp.concatenate([ht, bias_sub[None, :], ones], axis=0)   # [D+2, N]

    r = _round_up(d + 2, 16)                                    # bf16 sublane packing
    n_pad = _round_up(max(num_nodes, 128), 128)                 # MXU/lane alignment

    def split_pad(t):
        # Exact-ish two-term bf16 split of an f32 table, padded and stacked.
        hi = t.astype(jnp.bfloat16)
        lo = (t - hi.astype(f32)).astype(jnp.bfloat16)
        pad = ((0, r - t.shape[0]), (0, n_pad - num_nodes))
        return jnp.concatenate([jnp.pad(hi, pad), jnp.pad(lo, pad)], axis=0)  # [2R, N_pad]

    a_tbl = split_pad(a_f32)
    b_tbl = split_pad(b_f32)

    # ---- edge tiling ----------------------------------------------------------
    # Keep >= 2 grid steps when possible (v7x megacore) but otherwise maximize
    # the tile; per-edge HBM traffic is only indices + output, so moderate tiles
    # already amortize the ~0.35us per-step overhead.
    edge_tile = max(128, min(edge_tile, _round_up(pl.cdiv(num_edges, 2), 128)))
    e_pad = _round_up(max(num_edges, edge_tile), edge_tile)
    num_tiles = e_pad // edge_tile

    src_p = jnp.pad(src.astype(jnp.int32), (0, e_pad - num_edges)).reshape(1, e_pad)
    dst_p = jnp.pad(dst.astype(jnp.int32), (0, e_pad - num_edges)).reshape(1, e_pad)

    cost = pl.CostEstimate(
        flops=2 * 2 * (2 * r) * n_pad * e_pad + 4 * r * e_pad,
        transcendentals=0,
        bytes_accessed=2 * (2 * r) * n_pad * 2 + 2 * e_pad * 4 + e_pad * 4,
    )

    out = pl.pallas_call(
        i2i_score_kernel,
        out_shape=jax.ShapeDtypeStruct((1, e_pad), jnp.float32),
        grid=(num_tiles,),
        in_specs=[
            pl.BlockSpec((1, edge_tile), lambda i: (0, i)),        # src ids per tile
            pl.BlockSpec((1, edge_tile), lambda i: (0, i)),        # dst ids per tile
            pl.BlockSpec((2 * r, n_pad), lambda i: (0, 0)),        # resident src table
            pl.BlockSpec((2 * r, n_pad), lambda i: (0, 0)),        # resident dst table
        ],
        out_specs=pl.BlockSpec((1, edge_tile), lambda i: (0, i)),
        compiler_params=pltpu.CompilerParams(
            dimension_semantics=("parallel",),
        ),
        cost_estimate=cost,
    )(src_p, dst_p, a_tbl, b_tbl)

    return out[0, :num_edges]


def _reference(h, src, dst, nid, bias):
    s = jnp.sum(h[src] * h[dst], axis=1)
    return s + bias[nid[src]] + bias[nid[dst]]


if __name__ == "__main__":
    # Small deterministic problem: 48 item nodes in the item-item subgraph
    # (drawn from 96 total items), 32-dim embeddings, 300 scored edges.
    N_TOTAL = 96     # number_of_nodes(ntype) in the full graph -> len(bias)
    N_SUB = 48       # nodes in item_item_graph
    D = 32           # embedding dim
    E = 300          # edges to score -> adaptive tile 256, grid=(2,)

    key = jax.random.PRNGKey(0)
    k_h, k_nid, k_src, k_dst, k_b = jax.random.split(key, 5)

    h = jax.random.normal(k_h, (N_SUB, D), jnp.float32)
    nid = jax.random.permutation(k_nid, N_TOTAL)[:N_SUB]            # subgraph NID map
    src = jax.random.randint(k_src, (E,), 0, N_SUB)
    dst = jax.random.randint(k_dst, (E,), 0, N_SUB)
    # bias is a learned parameter (zeros at init); use nonzero values here so the
    # bias-add path is actually exercised by the check.
    bias = 0.1 * jax.random.normal(k_b, (N_TOTAL,), jnp.float32)

    out = item_to_item_score(h, src, dst, nid, bias)
    out = jax.block_until_ready(out)

    ref = _reference(h, src, dst, nid, bias)
    assert out.shape == (E,)
    # Tolerance budget: the MXU gather uses a two-term bf16 split of the f32
    # table (~2^-18 relative per gathered element) -> worst-case per-edge score
    # error well under 1e-3 at these magnitudes.
    assert jnp.allclose(out, ref, atol=1e-3, rtol=1e-3), "Pallas kernel mismatch vs reference"

    print("KERNEL_OK")
</pallas_src>

<mosaic_0001>
module attributes {stable_mosaic.version = 11 : i64} {
  func.func @i2i_score_kernel(%arg0: i32, %arg1: memref<1x256xi32, #tpu.memory_space<vmem>>, %arg2: memref<1x256xi32, #tpu.memory_space<vmem>>, %arg3: memref<96x128xbf16, #tpu.memory_space<vmem>>, %arg4: memref<96x128xbf16, #tpu.memory_space<vmem>>, %arg5: memref<1x256xf32, #tpu.memory_space<vmem>>) attributes {dimension_semantics = [#tpu.dimension_semantics<parallel>], iteration_bounds = array<i64: 2>, scalar_prefetch = 0 : i64, scratch_operands = 0 : i64, tpu.core_type = #tpu.core_type<tc>, window_params = [{transform_indices = @transform_0, window_bounds = array<i64: 1, 256>}, {transform_indices = @transform_1, window_bounds = array<i64: 1, 256>}, {pipeline_mode = #tpu.pipeline_mode<synchronous>, transform_indices = @transform_2, window_bounds = array<i64: 96, 128>}, {pipeline_mode = #tpu.pipeline_mode<synchronous>, transform_indices = @transform_3, window_bounds = array<i64: 96, 128>}, {transform_indices = @transform_4, window_bounds = array<i64: 1, 256>}]} {
    %0 = tpu.iota {dimensions = array<i32: 0>} : vector<128x256xi32>
    %c0 = arith.constant 0 : index
    %c0_0 = arith.constant 0 : index
    %1 = vector.load %arg1[%c0, %c0_0] : memref<1x256xi32, #tpu.memory_space<vmem>>, vector<1x256xi32>
    %2 = vector.broadcast %1 : vector<1x256xi32> to vector<128x256xi32>
    %3 = arith.cmpi eq, %0, %2 : vector<128x256xi32>
    %cst = arith.constant 1.000000e+00 : f32
    %cst_1 = arith.constant 0.000000e+00 : f32
    %4 = vector.broadcast %cst : f32 to vector<128x256xf32>
    %5 = vector.broadcast %cst_1 : f32 to vector<128x256xf32>
    %6 = arith.select %3, %4, %5 : vector<128x256xi1>, vector<128x256xf32>
    %7 = arith.truncf %6 : vector<128x256xf32> to vector<128x256xbf16>
    %c0_2 = arith.constant 0 : index
    %c0_3 = arith.constant 0 : index
    %8 = vector.load %arg2[%c0_2, %c0_3] : memref<1x256xi32, #tpu.memory_space<vmem>>, vector<1x256xi32>
    %9 = vector.broadcast %8 : vector<1x256xi32> to vector<128x256xi32>
    %10 = arith.cmpi eq, %0, %9 : vector<128x256xi32>
    %cst_4 = arith.constant 1.000000e+00 : f32
    %cst_5 = arith.constant 0.000000e+00 : f32
    %11 = vector.broadcast %cst_4 : f32 to vector<128x256xf32>
    %12 = vector.broadcast %cst_5 : f32 to vector<128x256xf32>
    %13 = arith.select %10, %11, %12 : vector<128x256xi1>, vector<128x256xf32>
    %14 = arith.truncf %13 : vector<128x256xf32> to vector<128x256xbf16>
    %c0_6 = arith.constant 0 : index
    %c0_7 = arith.constant 0 : index
    %15 = vector.load %arg3[%c0_6, %c0_7] : memref<96x128xbf16, #tpu.memory_space<vmem>>, vector<96x128xbf16>
    %cst_8 = arith.constant dense<0.000000e+00> : vector<96x256xf32>
    %16 = tpu.matmul %15, %7, %cst_8 {dimension_numbers = #tpu.dot_dimension_numbers<[1], [0], [0], [1], [0, 0, 1, 1], [], []>} : vector<96x128xbf16>, vector<128x256xbf16>, vector<96x256xf32> -> vector<96x256xf32>
    %c0_9 = arith.constant 0 : index
    %c0_10 = arith.constant 0 : index
    %17 = vector.load %arg4[%c0_9, %c0_10] : memref<96x128xbf16, #tpu.memory_space<vmem>>, vector<96x128xbf16>
    %cst_11 = arith.constant dense<0.000000e+00> : vector<96x256xf32>
    %18 = tpu.matmul %17, %14, %cst_11 {dimension_numbers = #tpu.dot_dimension_numbers<[1], [0], [0], [1], [0, 0, 1, 1], [], []>} : vector<96x128xbf16>, vector<128x256xbf16>, vector<96x256xf32> -> vector<96x256xf32>
    %19 = vector.extract_strided_slice %16 {offsets = [0, 0], sizes = [48, 256], strides = [1, 1]} : vector<96x256xf32> to vector<48x256xf32>
    %20 = vector.extract_strided_slice %16 {offsets = [48, 0], sizes = [48, 256], strides = [1, 1]} : vector<96x256xf32> to vector<48x256xf32>
    %21 = arith.addf %19, %20 : vector<48x256xf32>
    %22 = vector.extract_strided_slice %18 {offsets = [0, 0], sizes = [48, 256], strides = [1, 1]} : vector<96x256xf32> to vector<48x256xf32>
    %23 = vector.extract_strided_slice %18 {offsets = [48, 0], sizes = [48, 256], strides = [1, 1]} : vector<96x256xf32> to vector<48x256xf32>
    %24 = arith.addf %22, %23 : vector<48x256xf32>
    %25 = arith.mulf %21, %24 : vector<48x256xf32>
    %cst_12 = arith.constant dense<0.000000e+00> : vector<256xf32>
    %26 = vector.multi_reduction <add>, %25, %cst_12 [0] : vector<48x256xf32> to vector<256xf32>
    %27 = vector.shape_cast %26 : vector<256xf32> to vector<1x256xf32>
    %c0_13 = arith.constant 0 : index
    %c0_14 = arith.constant 0 : index
    %28 = vector.load %arg5[%c0_13, %c0_14] : memref<1x256xf32, #tpu.memory_space<vmem>>, vector<1x256xf32>
    tpu.vector_store %arg5[%c0_13, %c0_14], %27 {strides = array<i32>} : memref<1x256xf32, #tpu.memory_space<vmem>>, vector<1x256xf32>,
    return
  }
  func.func @transform_0(%arg0: i32) -> (i32, i32) {
    %c0_i32 = arith.constant 0 : i32
    %c0_i32_0 = arith.constant 0 : i32
    return %c0_i32, %arg0 : i32, i32
  }
  func.func @transform_1(%arg0: i32) -> (i32, i32) {
    %c0_i32 = arith.constant 0 : i32
    %c0_i32_0 = arith.constant 0 : i32
    return %c0_i32, %arg0 : i32, i32
  }
  func.func @transform_2(%arg0: i32) -> (i32, i32) {
    %c0_i32 = arith.constant 0 : i32
    %c0_i32_0 = arith.constant 0 : i32
    %c0_i32_1 = arith.constant 0 : i32
    return %c0_i32, %c0_i32_0 : i32, i32
  }
  func.func @transform_3(%arg0: i32) -> (i32, i32) {
    %c0_i32 = arith.constant 0 : i32
    %c0_i32_0 = arith.constant 0 : i32
    %c0_i32_1 = arith.constant 0 : i32
    return %c0_i32, %c0_i32_0 : i32, i32
  }
  func.func @transform_4(%arg0: i32) -> (i32, i32) {
    %c0_i32 = arith.constant 0 : i32
    %c0_i32_0 = arith.constant 0 : i32
    return %c0_i32, %arg0 : i32, i32
  }
}

</mosaic_0001>

<llo_original>
// kernel: tpu_custom_call.1
$region0: #{tpu_custom_call.1}
  #allocation0 [shape = 'u32[]', space=smem, size = 0x4, offset = 0x4, fixed_abs, tag = 'smem constant byte address 0x4 - core index']
  #allocation1 [shape = 'u32[144,128]{1,0:T(1,128)}', space=vmem, size = 0x12000, scoped, tag = 'internal scratch']
  %s0 = inlined_call_operand.hbm [shape: s32[1,512], index: 0, kind: input, shape index: {}]
  %s1 = inlined_call_operand.hbm [shape: s32[1,512], index: 1, kind: input, shape index: {}]
  %s2 = inlined_call_operand.hbm [shape: bf16[96,128], index: 2, kind: input, shape index: {}]
  %s3 = inlined_call_operand.hbm [shape: bf16[96,128], index: 3, kind: input, shape index: {}]
  %s4 = inlined_call_operand.hbm [shape: f32[1,512], index: 4, kind: output, shape index: {}]
  %s5 = sld [smem:[#allocation0]]
  $region65: #{tpu_custom_call.1} parent=0
    _
  %s7 = ssub.s32 1, %s5
  %s8 = scalar_select 0, %s7, %s5
  $region1: #{tpu_custom_call.1} parent=0
    #allocation2 [shape = 'u8[2048]{0}', space=vmem, size = 0x800, scoped, tag = 'input window, operand 0']
    #allocation3 [shape = 's32[2]{0}', space=sflag, size = 0x8, scoped, tag = 'scoped memory for tpu_custom_call.1']
    #allocation4 [shape = 's32[2]{0}', space=sflag, size = 0x8, scoped, tag = 'scoped memory for tpu_custom_call.1']
    #allocation5 [shape = 'u8[2048]{0}', space=vmem, size = 0x800, scoped, tag = 'input window, operand 1']
    #allocation6 [shape = 's32[2]{0}', space=sflag, size = 0x8, scoped, tag = 'scoped memory for tpu_custom_call.1']
    #allocation7 [shape = 'u8[24576]{0}', space=vmem, size = 0x6000, scoped, tag = 'input window, operand 2, single buffered']
    #allocation8 [shape = 'u8[24576]{0}', space=vmem, size = 0x6000, scoped, tag = 'input window, operand 3, single buffered']
    #allocation9 [shape = 's32[1]{0}', space=sflag, size = 0x4, scoped, tag = 'scoped memory for tpu_custom_call.1']
    #allocation10 [shape = 'u8[2048]{0}', space=vmem, size = 0x800, scoped, tag = 'output window, operand 0']
    %9 = vsyncpa [#allocation3], 0
    %s10 = scalar_lea.sflag [#allocation3], 1
    %11 = vsyncpa %s10, 0
    %12 = vsyncpa [#allocation6], 0
    %s13 = scalar_lea.sflag [#allocation6], 1
    %14 = vsyncpa %s13, 0
    %15 = vsyncpa [#allocation9], 0
    %16 = vsyncpa [#allocation4], 0
    %s17 = scalar_lea.sflag [#allocation4], 1
    %18 = vsyncpa %s17, 0
    loop: start=0, step=1, limit=4
    $region2: #{tpu_custom_call.1} parent=1 // loop_pre_header
      _
    $region3: #{tpu_custom_call.1} parent=1 // loop_header
      %s20 = sphi 0, %s24
      %p21 = scmp.ge.s32.totalorder %s20, 4
      %s30 = sphi 0, %s32
      %s33 = sphi 0, %s30
      %s34 = sphi 0, %s33
      %s50 = sphi 0, %s34
      %s56 = sphi 0, %s58
      %s59 = sphi 0, %s56
      %s60 = sphi 0, %s59
      %s76 = sphi 0, %s60
      %s80 = sphi 0, %s80
      %s82 = sphi 0, %s80
      %s83 = sphi 0, %s82
      %s97 = sphi 0, %s83
      %s101 = sphi 0, %s101
      %s103 = sphi 0, %s101
      %s104 = sphi 0, %s103
      %s118 = sphi 0, %s104
      %s124 = sphi 0, %s126
      %s127 = sphi 0, %s124
      %s128 = sphi 0, %s127
      %s144 = sphi 0, %s128
    $region4: #{tpu_custom_call.1} parent=1 // loop_header_branch
      %23 = sbr.rel (%p21) target = $region8
    $region5: #{tpu_custom_call.1} parent=1 // loop_body
      %s25 = ssub.s32 %s20, 1
      %s26 = ssub.s32 %s20, 2
      %s27 = sadd.s32 %s20, 1
      %s28 = ssub.s32 %s20, %s27
      %p29 = scmp.eq.s32.totalorder %s28, 0
      %s31 = sadd.s32 %s30, 1
      %s32 = scalar_select %p29, %s30, %s31
      %p35 = pneg %p29
      %p36 = scmp.eq.s32.totalorder %s20, 1
      %p37 = por %p35, %p36
      %p38 = scmp.ne.s32.totalorder %s30, %s33
      %p39 = scmp.eq.s32.totalorder %s20, 0
      %p40 = por %p38, %p39
      %p41 = scmp.ne.s32.totalorder %s30, %s33
      %p42 = scmp.eq.s32.totalorder %s25, 1
      %p43 = por %p41, %p42
      %p44 = scmp.ne.s32.totalorder %s33, %s34
      %p45 = scmp.eq.s32.totalorder %s25, 0
      %p46 = por %p44, %p45
      %p47 = scmp.ne.s32.totalorder %s33, %s34
      %p48 = scmp.eq.s32.totalorder %s26, 1
      %p49 = por %p47, %p48
      %p51 = scmp.ne.s32.totalorder %s34, %s50
      %p52 = scmp.eq.s32.totalorder %s26, 0
      %p53 = por %p51, %p52
      %s54 = ssub.s32 %s20, %s27
      %p55 = scmp.eq.s32.totalorder %s54, 0
      %s57 = sadd.s32 %s56, 1
      %s58 = scalar_select %p55, %s56, %s57
      %p61 = pneg %p55
      %p62 = scmp.eq.s32.totalorder %s20, 1
      %p63 = por %p61, %p62
      %p64 = scmp.ne.s32.totalorder %s56, %s59
      %p65 = scmp.eq.s32.totalorder %s20, 0
      %p66 = por %p64, %p65
      %p67 = scmp.ne.s32.totalorder %s56, %s59
      %p68 = scmp.eq.s32.totalorder %s25, 1
      %p69 = por %p67, %p68
      %p70 = scmp.ne.s32.totalorder %s59, %s60
      %p71 = scmp.eq.s32.totalorder %s25, 0
      %p72 = por %p70, %p71
      %p73 = scmp.ne.s32.totalorder %s59, %s60
      %p74 = scmp.eq.s32.totalorder %s26, 1
      %p75 = por %p73, %p74
      %p77 = scmp.ne.s32.totalorder %s60, %s76
      %p78 = scmp.eq.s32.totalorder %s26, 0
      %p79 = por %p77, %p78
      %s81 = sadd.s32 %s80, 1
      %p84 = scmp.eq.s32.totalorder %s20, 1
      %p85 = scmp.ne.s32.totalorder %s80, %s82
      %p86 = scmp.eq.s32.totalorder %s20, 0
      %p87 = por %p85, %p86
      %p88 = scmp.ne.s32.totalorder %s80, %s82
      %p89 = scmp.eq.s32.totalorder %s25, 1
      %p90 = por %p88, %p89
      %p91 = scmp.ne.s32.totalorder %s82, %s83
      %p92 = scmp.eq.s32.totalorder %s25, 0
      %p93 = por %p91, %p92
      %p94 = scmp.ne.s32.totalorder %s82, %s83
      %p95 = scmp.eq.s32.totalorder %s26, 1
      %p96 = por %p94, %p95
      %p98 = scmp.ne.s32.totalorder %s83, %s97
      %p99 = scmp.eq.s32.totalorder %s26, 0
      %p100 = por %p98, %p99
      %s102 = sadd.s32 %s101, 1
      %p105 = scmp.eq.s32.totalorder %s20, 1
      %p106 = scmp.ne.s32.totalorder %s101, %s103
      %p107 = scmp.eq.s32.totalorder %s20, 0
      %p108 = por %p106, %p107
      %p109 = scmp.ne.s32.totalorder %s101, %s103
      %p110 = scmp.eq.s32.totalorder %s25, 1
      %p111 = por %p109, %p110
      %p112 = scmp.ne.s32.totalorder %s103, %s104
      %p113 = scmp.eq.s32.totalorder %s25, 0
      %p114 = por %p112, %p113
      %p115 = scmp.ne.s32.totalorder %s103, %s104
      %p116 = scmp.eq.s32.totalorder %s26, 1
      %p117 = por %p115, %p116
      %p119 = scmp.ne.s32.totalorder %s104, %s118
      %p120 = scmp.eq.s32.totalorder %s26, 0
      %p121 = por %p119, %p120
      %s122 = ssub.s32 %s20, %s27
      %p123 = scmp.eq.s32.totalorder %s122, 0
      %s125 = sadd.s32 %s124, 1
      %s126 = scalar_select %p123, %s124, %s125
      %p129 = pneg %p123
      %p130 = scmp.eq.s32.totalorder %s20, 1
      %p131 = por %p129, %p130
      %p132 = scmp.ne.s32.totalorder %s124, %s127
      %p133 = scmp.eq.s32.totalorder %s20, 0
      %p134 = por %p132, %p133
      %p135 = scmp.ne.s32.totalorder %s124, %s127
      %p136 = scmp.eq.s32.totalorder %s25, 1
      %p137 = por %p135, %p136
      %p138 = scmp.ne.s32.totalorder %s127, %s128
      %p139 = scmp.eq.s32.totalorder %s25, 0
      %p140 = por %p138, %p139
      %p141 = scmp.ne.s32.totalorder %s127, %s128
      %p142 = scmp.eq.s32.totalorder %s26, 1
      %p143 = por %p141, %p142
      %p145 = scmp.ne.s32.totalorder %s128, %s144
      %p146 = scmp.eq.s32.totalorder %s26, 0
      %p147 = por %p145, %p146
      %p148 = scmp.le.s32.totalorder 1, %s20
      %p149 = scmp.lt.s32.totalorder %s20, 3
      %p150 = pnand %p148, %p149
      %p151 = pneg %p150
      // Predicated region
      $region9: #{tpu_custom_call.1} parent=5 // pred_check
        _
      $region10: #{tpu_custom_call.1} parent=5 // pred_check_branch
        %153 = sbr.rel (%p150) target = $region12
      $region11: #{tpu_custom_call.1} parent=5 // pred_region
        %s154 = ssub.s32 %s20, 1
        // Predicated region
        $region13: #{tpu_custom_call.1} parent=11 // pred_check
          %p155 = pneg %p93
        $region14: #{tpu_custom_call.1} parent=11 // pred_check_branch
          %157 = sbr.rel (%p155) target = $region16
        $region15: #{tpu_custom_call.1} parent=11 // pred_region
          %s159 = ssub.s32 768, 768
          %160 = vsyncadd [#allocation6], %s159
          %s161 = sshll.u32 [#allocation7], 4
          %s162 = int_to_ptr.vmem [resolvable:$true] %s161
          %167 = dma.hbm_to_vmem [thread:$0]  %s2, 768, %s162, [#allocation6], 64, 64, 4
        $region16: #{tpu_custom_call.1} parent=11 // pred_fallthru
          _
        // Predicated region
        $region17: #{tpu_custom_call.1} parent=11 // pred_check
          %p168 = pneg %p114
        $region18: #{tpu_custom_call.1} parent=11 // pred_check_branch
          %170 = sbr.rel (%p168) target = $region20
        $region19: #{tpu_custom_call.1} parent=11 // pred_region
          %s172 = ssub.s32 768, 768
          %173 = vsyncadd [#allocation9], %s172
          %s174 = sshll.u32 [#allocation8], 4
          %s175 = int_to_ptr.vmem [resolvable:$true] %s174
          %180 = dma.hbm_to_vmem [thread:$0]  %s3, 768, %s175, [#allocation9], 64, 64, 4
        $region20: #{tpu_custom_call.1} parent=11 // pred_fallthru
          _
      $region12: #{tpu_custom_call.1} parent=5 // pred_fallthru
        _
      %p181 = scmp.lt.s32.totalorder %s20, 2
      // Predicated region
      $region21: #{tpu_custom_call.1} parent=5 // pred_check
        %p182 = pneg %p181
      $region22: #{tpu_custom_call.1} parent=5 // pred_check_branch
        %184 = sbr.rel (%p182) target = $region24
      $region23: #{tpu_custom_call.1} parent=5 // pred_region
        // Predicated region
        $region25: #{tpu_custom_call.1} parent=23 // pred_check
          %p185 = pneg %p40
        $region26: #{tpu_custom_call.1} parent=23 // pred_check_branch
          %187 = sbr.rel (%p185) target = $region28
        $region27: #{tpu_custom_call.1} parent=23 // pred_region
          %s188 = sand.u32 %s30, 1
          %s189 = scalar_lea.sflag [#allocation3], %s188
          %s190 = sand.u32 %s30, 1
          %s191 = smul.addr %s190, 2
          %s192 = scalar_lea.vmem [#allocation2], %s191
          %s193 = smul.u32 2, %s20
          %s195 = ssub.s32 32, 32
          %196 = vsyncadd %s189, %s195
          %s197 = smul.addr %s193, 16
          %s198 = scalar_lea.hbm %s0, %s197
          %s200 = sshll.u32 %s192, 4
          %s201 = int_to_ptr.vmem [resolvable:$true] %s200
          %203 = dma.hbm_to_vmem [thread:$0]  %s198, 32, %s201, %s189
        $region28: #{tpu_custom_call.1} parent=23 // pred_fallthru
          _
        // Predicated region
        $region29: #{tpu_custom_call.1} parent=23 // pred_check
          %p204 = pneg %p66
        $region30: #{tpu_custom_call.1} parent=23 // pred_check_branch
          %206 = sbr.rel (%p204) target = $region32
        $region31: #{tpu_custom_call.1} parent=23 // pred_region
          %s207 = sand.u32 %s20, 1
          %s208 = scalar_lea.sflag [#allocation6], %s207
          %s209 = sand.u32 %s56, 1
          %s210 = smul.addr %s209, 2
          %s211 = scalar_lea.vmem [#allocation5], %s210
          %s212 = smul.u32 2, %s20
          %s214 = ssub.s32 32, 32
          %215 = vsyncadd %s208, %s214
          %s216 = smul.addr %s212, 16
          %s217 = scalar_lea.hbm %s1, %s216
          %s219 = sshll.u32 %s211, 4
          %s220 = int_to_ptr.vmem [resolvable:$true] %s219
          %222 = dma.hbm_to_vmem [thread:$0]  %s217, 32, %s220, %s208
        $region32: #{tpu_custom_call.1} parent=23 // pred_fallthru
          _
      $region24: #{tpu_custom_call.1} parent=5 // pred_fallthru
        _
      %p223 = scmp.le.s32.totalorder 1, %s20
      %p224 = scmp.lt.s32.totalorder %s20, 3
      %p225 = pnand %p223, %p224
      %p226 = pneg %p225
      // Predicated region
      $region33: #{tpu_custom_call.1} parent=5 // pred_check
        _
      $region34: #{tpu_custom_call.1} parent=5 // pred_check_branch
        %228 = sbr.rel (%p225) target = $region36
      $region35: #{tpu_custom_call.1} parent=5 // pred_region
        %s229 = ssub.s32 %s20, 1
        %s230 = sand.u32 %s33, 1
        %s231 = scalar_lea.sflag [#allocation3], %s230
        %s232 = sand.u32 %s33, 1
        %s233 = smul.addr %s232, 2
        %s234 = scalar_lea.vmem [#allocation2], %s233
        // Predicated region
        $region37: #{tpu_custom_call.1} parent=35 // pred_check
          %p235 = pneg %p46
        $region38: #{tpu_custom_call.1} parent=35 // pred_check_branch
          %237 = sbr.rel (%p235) target = $region40
        $region39: #{tpu_custom_call.1} parent=35 // pred_region
          %238 = dma.done %s231, 32
        $region40: #{tpu_custom_call.1} parent=35 // pred_fallthru
          _
        %s239 = sand.u32 %s25, 1
        %s240 = scalar_lea.sflag [#allocation6], %s239
        %s241 = sand.u32 %s59, 1
        %s242 = smul.addr %s241, 2
        %s243 = scalar_lea.vmem [#allocation5], %s242
        // Predicated region
        $region41: #{tpu_custom_call.1} parent=35 // pred_check
          %p244 = pneg %p72
        $region42: #{tpu_custom_call.1} parent=35 // pred_check_branch
          %246 = sbr.rel (%p244) target = $region44
        $region43: #{tpu_custom_call.1} parent=35 // pred_region
          %247 = dma.done %s240, 32
        $region44: #{tpu_custom_call.1} parent=35 // pred_fallthru
          _
        // Predicated region
        $region45: #{tpu_custom_call.1} parent=35 // pred_check
          %p248 = pneg %p93
        $region46: #{tpu_custom_call.1} parent=35 // pred_check_branch
          %250 = sbr.rel (%p248) target = $region48
        $region47: #{tpu_custom_call.1} parent=35 // pred_region
          %251 = dma.done [#allocation6], 768
        $region48: #{tpu_custom_call.1} parent=35 // pred_fallthru
          _
        // Predicated region
        $region49: #{tpu_custom_call.1} parent=35 // pred_check
          %p252 = pneg %p114
        $region50: #{tpu_custom_call.1} parent=35 // pred_check_branch
          %254 = sbr.rel (%p252) target = $region52
        $region51: #{tpu_custom_call.1} parent=35 // pred_region
          %255 = dma.done [#allocation9], 768
        $region52: #{tpu_custom_call.1} parent=35 // pred_fallthru
          _
        %s256 = sand.u32 %s33, 1
        %s257 = scalar_lea.sflag [#allocation3], %s256
        %s258 = sand.u32 %s33, 1
        %s259 = smul.addr %s258, 2
        %s260 = scalar_lea.vmem [#allocation2], %s259
        %p261 = pneg %p46
        %p262 = pneg %p43
        %s263 = sand.u32 %s25, 1
        %s264 = scalar_lea.sflag [#allocation6], %s263
        %s265 = sand.u32 %s59, 1
        %s266 = smul.addr %s265, 2
        %s267 = scalar_lea.vmem [#allocation5], %s266
        %p268 = pneg %p72
        %p269 = pneg %p69
        %p270 = pneg %p93
        %p271 = pneg %p90
        %p272 = pneg %p114
        %p273 = pneg %p111
        %p274 = pneg %p140
        %p275 = pneg %p137
        %s276 = sand.u32 %s127, 1
        %s277 = scalar_lea.sflag [#allocation4], %s276
        %s278 = sand.u32 %s127, 1
        %s279 = smul.addr %s278, 2
        %s280 = scalar_lea.vmem [#allocation10], %s279
        %s281 = smul.u32 2, %s25
        %s282 = smul.u32 2, %s25
        %s283 = smul.u32 2, %s25
        %v285 = vlaneseq
        %v286 = vshrl.u32 %v285, 7
        %v287 = vadd.s32 %v286, 8
        %v288 = vadd.s32 %v286, 16
        %v289 = vadd.s32 %v286, 24
        %v290 = vadd.s32 %v286, 32
        %v291 = vadd.s32 %v286, 40
        %v292 = vadd.s32 %v286, 48
        %v293 = vadd.s32 %v286, 56
        %v294 = vadd.s32 %v286, 64
        %v295 = vadd.s32 %v286, 72
        %v296 = vadd.s32 %v286, 80
        %v297 = vadd.s32 %v286, 88
        %v298 = vadd.s32 %v286, 96
        %v299 = vadd.s32 %v286, 104
        %v300 = vadd.s32 %v286, 112
        %v301 = vadd.s32 %v286, 120
        %v302 = vld [vmem:[%s234] sm:$0x3]
        %v303 = vlaneseq
        %v304 = vshrl.u32 %v303, 7
        %v305 = vsub.s32 0, %v304
        %v306 = vrot.slane %v302, %v305
        %v307 = vlaneseq
        %v308 = vshrl.u32 %v307, 7
        %v309 = vsub.s32 1, %v308
        %v310 = vrot.slane %v302, %v309
        %vm311 = vcmp.eq.s32.totalorder %v286, %v306
        %vm312 = vcmp.eq.s32.totalorder %v286, %v310
        %vm313 = vcmp.eq.s32.totalorder %v287, %v306
        %vm314 = vcmp.eq.s32.totalorder %v287, %v310
        %vm315 = vcmp.eq.s32.totalorder %v288, %v306
        %vm316 = vcmp.eq.s32.totalorder %v288, %v310
        %vm317 = vcmp.eq.s32.totalorder %v289, %v306
        %vm318 = vcmp.eq.s32.totalorder %v289, %v310
        %vm319 = vcmp.eq.s32.totalorder %v290, %v306
        %vm320 = vcmp.eq.s32.totalorder %v290, %v310
        %vm321 = vcmp.eq.s32.totalorder %v291, %v306
        %vm322 = vcmp.eq.s32.totalorder %v291, %v310
        %vm323 = vcmp.eq.s32.totalorder %v292, %v306
        %vm324 = vcmp.eq.s32.totalorder %v292, %v310
        %vm325 = vcmp.eq.s32.totalorder %v293, %v306
        %vm326 = vcmp.eq.s32.totalorder %v293, %v310
        %vm327 = vcmp.eq.s32.totalorder %v294, %v306
        %vm328 = vcmp.eq.s32.totalorder %v294, %v310
        %vm329 = vcmp.eq.s32.totalorder %v295, %v306
        %vm330 = vcmp.eq.s32.totalorder %v295, %v310
        %vm331 = vcmp.eq.s32.totalorder %v296, %v306
        %vm332 = vcmp.eq.s32.totalorder %v296, %v310
        %vm333 = vcmp.eq.s32.totalorder %v297, %v306
        %vm334 = vcmp.eq.s32.totalorder %v297, %v310
        %vm335 = vcmp.eq.s32.totalorder %v298, %v306
        %vm336 = vcmp.eq.s32.totalorder %v298, %v310
        %vm337 = vcmp.eq.s32.totalorder %v299, %v306
        %vm338 = vcmp.eq.s32.totalorder %v299, %v310
        %vm339 = vcmp.eq.s32.totalorder %v300, %v306
        %vm340 = vcmp.eq.s32.totalorder %v300, %v310
        %vm341 = vcmp.eq.s32.totalorder %v301, %v306
        %vm342 = vcmp.eq.s32.totalorder %v301, %v310
        %v343 = vsel %vm311, 1.0, 0.0
        %v344 = vsel %vm312, 1.0, 0.0
        %v345 = vsel %vm313, 1.0, 0.0
        %v346 = vsel %vm314, 1.0, 0.0
        %v347 = vsel %vm315, 1.0, 0.0
        %v348 = vsel %vm316, 1.0, 0.0
        %v349 = vsel %vm317, 1.0, 0.0
        %v350 = vsel %vm318, 1.0, 0.0
        %v351 = vsel %vm319, 1.0, 0.0
        %v352 = vsel %vm320, 1.0, 0.0
        %v353 = vsel %vm321, 1.0, 0.0
        %v354 = vsel %vm322, 1.0, 0.0
        %v355 = vsel %vm323, 1.0, 0.0
        %v356 = vsel %vm324, 1.0, 0.0
        %v357 = vsel %vm325, 1.0, 0.0
        %v358 = vsel %vm326, 1.0, 0.0
        %v359 = vsel %vm327, 1.0, 0.0
        %v360 = vsel %vm328, 1.0, 0.0
        %v361 = vsel %vm329, 1.0, 0.0
        %v362 = vsel %vm330, 1.0, 0.0
        %v363 = vsel %vm331, 1.0, 0.0
        %v364 = vsel %vm332, 1.0, 0.0
        %v365 = vsel %vm333, 1.0, 0.0
        %v366 = vsel %vm334, 1.0, 0.0
        %v367 = vsel %vm335, 1.0, 0.0
        %v368 = vsel %vm336, 1.0, 0.0
        %v369 = vsel %vm337, 1.0, 0.0
        %v370 = vsel %vm338, 1.0, 0.0
        %v371 = vsel %vm339, 1.0, 0.0
        %v372 = vsel %vm340, 1.0, 0.0
        %v373 = vsel %vm341, 1.0, 0.0
        %v374 = vsel %vm342, 1.0, 0.0
        %v375 = vpack.c.bf16 %v345, %v343
        %v376 = vpack.c.bf16 %v346, %v344
        %v377 = vpack.c.bf16 %v349, %v347
        %v378 = vpack.c.bf16 %v350, %v348
        %v379 = vpack.c.bf16 %v353, %v351
        %v380 = vpack.c.bf16 %v354, %v352
        %v381 = vpack.c.bf16 %v357, %v355
        %v382 = vpack.c.bf16 %v358, %v356
        %v383 = vpack.c.bf16 %v361, %v359
        %v384 = vpack.c.bf16 %v362, %v360
        %v385 = vpack.c.bf16 %v365, %v363
        %v386 = vpack.c.bf16 %v366, %v364
        %v387 = vpack.c.bf16 %v369, %v367
        %v388 = vpack.c.bf16 %v370, %v368
        %v389 = vpack.c.bf16 %v373, %v371
        %v390 = vpack.c.bf16 %v374, %v372
        %v391 = vld [vmem:[%s243] sm:$0x3]
        %v392 = vlaneseq
        %v393 = vshrl.u32 %v392, 7
        %v394 = vsub.s32 0, %v393
        %v395 = vrot.slane %v391, %v394
        %v396 = vlaneseq
        %v397 = vshrl.u32 %v396, 7
        %v398 = vsub.s32 1, %v397
        %v399 = vrot.slane %v391, %v398
        %vm400 = vcmp.eq.s32.totalorder %v286, %v395
        %vm401 = vcmp.eq.s32.totalorder %v286, %v399
        %vm402 = vcmp.eq.s32.totalorder %v287, %v395
        %vm403 = vcmp.eq.s32.totalorder %v287, %v399
        %vm404 = vcmp.eq.s32.totalorder %v288, %v395
        %vm405 = vcmp.eq.s32.totalorder %v288, %v399
        %vm406 = vcmp.eq.s32.totalorder %v289, %v395
        %vm407 = vcmp.eq.s32.totalorder %v289, %v399
        %vm408 = vcmp.eq.s32.totalorder %v290, %v395
        %vm409 = vcmp.eq.s32.totalorder %v290, %v399
        %vm410 = vcmp.eq.s32.totalorder %v291, %v395
        %vm411 = vcmp.eq.s32.totalorder %v291, %v399
        %vm412 = vcmp.eq.s32.totalorder %v292, %v395
        %vm413 = vcmp.eq.s32.totalorder %v292, %v399
        %vm414 = vcmp.eq.s32.totalorder %v293, %v395
        %vm415 = vcmp.eq.s32.totalorder %v293, %v399
        %vm416 = vcmp.eq.s32.totalorder %v294, %v395
        %vm417 = vcmp.eq.s32.totalorder %v294, %v399
        %vm418 = vcmp.eq.s32.totalorder %v295, %v395
        %vm419 = vcmp.eq.s32.totalorder %v295, %v399
        %vm420 = vcmp.eq.s32.totalorder %v296, %v395
        %vm421 = vcmp.eq.s32.totalorder %v296, %v399
        %vm422 = vcmp.eq.s32.totalorder %v297, %v395
        %vm423 = vcmp.eq.s32.totalorder %v297, %v399
        %vm424 = vcmp.eq.s32.totalorder %v298, %v395
        %vm425 = vcmp.eq.s32.totalorder %v298, %v399
        %vm426 = vcmp.eq.s32.totalorder %v299, %v395
        %vm427 = vcmp.eq.s32.totalorder %v299, %v399
        %vm428 = vcmp.eq.s32.totalorder %v300, %v395
        %vm429 = vcmp.eq.s32.totalorder %v300, %v399
        %vm430 = vcmp.eq.s32.totalorder %v301, %v395
        %vm431 = vcmp.eq.s32.totalorder %v301, %v399
        %v432 = vsel %vm400, 1.0, 0.0
        %v433 = vsel %vm401, 1.0, 0.0
        %v434 = vsel %vm402, 1.0, 0.0
        %v435 = vsel %vm403, 1.0, 0.0
        %v436 = vsel %vm404, 1.0, 0.0
        %v437 = vsel %vm405, 1.0, 0.0
        %v438 = vsel %vm406, 1.0, 0.0
        %v439 = vsel %vm407, 1.0, 0.0
        %v440 = vsel %vm408, 1.0, 0.0
        %v441 = vsel %vm409, 1.0, 0.0
        %v442 = vsel %vm410, 1.0, 0.0
        %v443 = vsel %vm411, 1.0, 0.0
        %v444 = vsel %vm412, 1.0, 0.0
        %v445 = vsel %vm413, 1.0, 0.0
        %v446 = vsel %vm414, 1.0, 0.0
        %v447 = vsel %vm415, 1.0, 0.0
        %v448 = vsel %vm416, 1.0, 0.0
        %v449 = vsel %vm417, 1.0, 0.0
        %v450 = vsel %vm418, 1.0, 0.0
        %v451 = vsel %vm419, 1.0, 0.0
        %v452 = vsel %vm420, 1.0, 0.0
        %v453 = vsel %vm421, 1.0, 0.0
        %v454 = vsel %vm422, 1.0, 0.0
        %v455 = vsel %vm423, 1.0, 0.0
        %v456 = vsel %vm424, 1.0, 0.0
        %v457 = vsel %vm425, 1.0, 0.0
        %v458 = vsel %vm426, 1.0, 0.0
        %v459 = vsel %vm427, 1.0, 0.0
        %v460 = vsel %vm428, 1.0, 0.0
        %v461 = vsel %vm429, 1.0, 0.0
        %v462 = vsel %vm430, 1.0, 0.0
        %v463 = vsel %vm431, 1.0, 0.0
        %v464 = vpack.c.bf16 %v434, %v432
        %v465 = vpack.c.bf16 %v435, %v433
        %v466 = vpack.c.bf16 %v438, %v436
        %v467 = vpack.c.bf16 %v439, %v437
        %v468 = vpack.c.bf16 %v442, %v440
        %v469 = vpack.c.bf16 %v443, %v441
        %v470 = vpack.c.bf16 %v446, %v444
        %v471 = vpack.c.bf16 %v447, %v445
        %v472 = vpack.c.bf16 %v450, %v448
        %v473 = vpack.c.bf16 %v451, %v449
        %v474 = vpack.c.bf16 %v454, %v452
        %v475 = vpack.c.bf16 %v455, %v453
        %v476 = vpack.c.bf16 %v458, %v456
        %v477 = vpack.c.bf16 %v459, %v457
        %v478 = vpack.c.bf16 %v462, %v460
        %v479 = vpack.c.bf16 %v463, %v461
        %v480 = vld [vmem:[#allocation7] sm:$0xf]
        %v481 = vld [vmem:[#allocation7 + $0x4] sm:$0xf]
        %v482 = vld [vmem:[#allocation7 + $0x8] sm:$0xf]
        %v483 = vld [vmem:[#allocation7 + $0xc] sm:$0xf]
        %v484 = vld [vmem:[#allocation7 + $0x10] sm:$0xf]
        %v485 = vld [vmem:[#allocation7 + $0x14] sm:$0xf]
        %v486 = vld [vmem:[#allocation7 + $0x18] sm:$0xf]
        %v487 = vld [vmem:[#allocation7 + $0x1c] sm:$0xf]
        %v488 = vld [vmem:[#allocation7 + $0x20] sm:$0xf]
        %v489 = vld [vmem:[#allocation7 + $0x24] sm:$0xf]
        %v490 = vld [vmem:[#allocation7 + $0x28] sm:$0xf]
        %v491 = vld [vmem:[#allocation7 + $0x2c] sm:$0xf]
        %v504 = vunpack.c.l.b16 %v480
        %v505 = vunpack.c.l.b16 %v481
        %v506 = vunpack.c.l.b16 %v482
        %v507 = vunpack.c.l.b16 %v483
        %v508 = vunpack.c.l.b16 %v484
        %v509 = vunpack.c.l.b16 %v485
        %v510 = vunpack.c.l.b16 %v486
        %v511 = vunpack.c.l.b16 %v487
        %v512 = vunpack.c.l.b16 %v488
        %v513 = vunpack.c.l.b16 %v489
        %v514 = vunpack.c.l.b16 %v490
        %v515 = vunpack.c.l.b16 %v491
        %v516 = vpack.c.b16 %v505, %v504
        %v517 = vpack.c.b16 %v507, %v506
        %v518 = vpack.c.b16 %v509, %v508
        %v519 = vpack.c.b16 %v511, %v510
        %v520 = vpack.c.b16 %v513, %v512
        %v521 = vpack.c.b16 %v515, %v514
        %528 = vmatprep.subr.bf16.mxu0 %v376
        %529 = vmatpush1.bf16.msra.mxu0 %v375
        %530 = vmatprep.subr.bf16.mxu0 %v378
        %531 = vmatpush1.bf16.msra.mxu0 %v377
        %532 = vmatprep.subr.bf16.mxu0 %v380
        %533 = vmatpush1.bf16.msra.mxu0 %v379
        %534 = vmatprep.subr.bf16.mxu0 %v382
        %535 = vmatpush1.bf16.msra.mxu0 %v381
        %536 = vmatprep.subr.bf16.mxu0 %v384
        %537 = vmatpush1.bf16.msra.mxu0 %v383
        %538 = vmatprep.subr.bf16.mxu0 %v386
        %539 = vmatpush1.bf16.msra.mxu0 %v385
        %540 = vmatprep.subr.bf16.mxu0 %v388
        %541 = vmatpush1.bf16.msra.mxu0 %v387
        %542 = vmatprep.subr.bf16.mxu0 %v390
        %543 = vmatpush1.bf16.msra.mxu0 %v389
        %544 = vmatprep.subr.bf16.mxu0 0
        %545 = vmatpush1.bf16.msra.mxu0 0
        %546 = vmatprep.subr.bf16.mxu0 0
        %547 = vmatpush1.bf16.msra.mxu0 0
        %548 = vmatprep.subr.bf16.mxu0 0
        %549 = vmatpush1.bf16.msra.mxu0 0
        %550 = vmatprep.subr.bf16.mxu0 0
        %551 = vmatpush1.bf16.msra.mxu0 0
        %552 = vmatprep.subr.bf16.mxu0 0
        %553 = vmatpush1.bf16.msra.mxu0 0
        %554 = vmatprep.subr.bf16.mxu0 0
        %555 = vmatpush1.bf16.msra.mxu0 0
        %556 = vmatprep.subr.bf16.mxu0 0
        %557 = vmatpush1.bf16.msra.mxu0 0
        %558 = vmatprep.subr.bf16.mxu0 0
        %559 = vmatpush1.bf16.msra.mxu0 0
        %560 = vmatprep.mubr.bf16.mxu0 0
        %561 = vmatmul.mubr.bf16.gmra.mrb[0].mxu0 %v516
        %v562 = vpop.f32.mrb[0].mxu0
        %v563 = vadd.f32 0.0, %v562
        %v564 = vpop.f32.mrb[0].mxu0
        %v565 = vadd.f32 0.0, %v564
        %v566 = vpop.f32.mrb[0].mxu0
        %v567 = vadd.f32 0.0, %v566
        %v568 = vpop.f32.mrb[0].mxu0
        %v569 = vadd.f32 0.0, %v568
        %570 = vmatprep.mubr.bf16.mxu0 0
        %571 = vmatmul.mubr.bf16.gmra.mrb[0].mxu0 %v517
        %v572 = vpop.f32.mrb[0].mxu0
        %v573 = vadd.f32 0.0, %v572
        %v574 = vpop.f32.mrb[0].mxu0
        %v575 = vadd.f32 0.0, %v574
        %v576 = vpop.f32.mrb[0].mxu0
        %v577 = vadd.f32 0.0, %v576
        %v578 = vpop.f32.mrb[0].mxu0
        %v579 = vadd.f32 0.0, %v578
        %580 = vmatprep.mubr.bf16.mxu0 0
        %581 = vmatmul.mubr.bf16.gmra.mrb[0].mxu0 %v518
        %v582 = vpop.f32.mrb[0].mxu0
        %v583 = vadd.f32 0.0, %v582
        %v584 = vpop.f32.mrb[0].mxu0
        %v585 = vadd.f32 0.0, %v584
        %v586 = vpop.f32.mrb[0].mxu0
        %v587 = vadd.f32 0.0, %v586
        %v588 = vpop.f32.mrb[0].mxu0
        %v589 = vadd.f32 0.0, %v588
        %590 = vmatprep.mubr.bf16.mxu0 0
        %591 = vmatmul.mubr.bf16.gmra.mrb[0].mxu0 %v519
        %v592 = vpop.f32.mrb[0].mxu0
        %v593 = vadd.f32 0.0, %v592
        %v594 = vpop.f32.mrb[0].mxu0
        %v595 = vadd.f32 0.0, %v594
        %v596 = vpop.f32.mrb[0].mxu0
        %v597 = vadd.f32 0.0, %v596
        %v598 = vpop.f32.mrb[0].mxu0
        %v599 = vadd.f32 0.0, %v598
        %600 = vmatprep.mubr.bf16.mxu0 0
        %601 = vmatmul.mubr.bf16.gmra.mrb[0].mxu0 %v520
        %v602 = vpop.f32.mrb[0].mxu0
        %v603 = vadd.f32 0.0, %v602
        %v604 = vpop.f32.mrb[0].mxu0
        %v605 = vadd.f32 0.0, %v604
        %v606 = vpop.f32.mrb[0].mxu0
        %v607 = vadd.f32 0.0, %v606
        %v608 = vpop.f32.mrb[0].mxu0
        %v609 = vadd.f32 0.0, %v608
        %610 = vmatprep.mubr.bf16.mxu0 0
        %611 = vmatmul.mubr.bf16.gmra.mrb[0].mxu0 %v521
        %v612 = vpop.f32.mrb[0].mxu0
        %v613 = vadd.f32 0.0, %v612
        %v614 = vpop.f32.mrb[0].mxu0
        %v615 = vadd.f32 0.0, %v614
        %v616 = vpop.f32.mrb[0].mxu0
        %v617 = vadd.f32 0.0, %v616
        %v618 = vpop.f32.mrb[0].mxu0
        %v619 = vadd.f32 0.0, %v618
        %620 = vdwg.mxu0
        %v621 = vld [vmem:[#allocation8] sm:$0xf]
        %v622 = vld [vmem:[#allocation8 + $0x4] sm:$0xf]
        %v623 = vld [vmem:[#allocation8 + $0x8] sm:$0xf]
        %v624 = vld [vmem:[#allocation8 + $0xc] sm:$0xf]
        %v625 = vld [vmem:[#allocation8 + $0x10] sm:$0xf]
        %v626 = vld [vmem:[#allocation8 + $0x14] sm:$0xf]
        %v627 = vld [vmem:[#allocation8 + $0x18] sm:$0xf]
        %v628 = vld [vmem:[#allocation8 + $0x1c] sm:$0xf]
        %v629 = vld [vmem:[#allocation8 + $0x20] sm:$0xf]
        %v630 = vld [vmem:[#allocation8 + $0x24] sm:$0xf]
        %v631 = vld [vmem:[#allocation8 + $0x28] sm:$0xf]
        %v632 = vld [vmem:[#allocation8 + $0x2c] sm:$0xf]
        %v645 = vunpack.c.l.b16 %v621
        %v646 = vunpack.c.l.b16 %v622
        %v647 = vunpack.c.l.b16 %v623
        %v648 = vunpack.c.l.b16 %v624
        %v649 = vunpack.c.l.b16 %v625
        %v650 = vunpack.c.l.b16 %v626
        %v651 = vunpack.c.l.b16 %v627
        %v652 = vunpack.c.l.b16 %v628
        %v653 = vunpack.c.l.b16 %v629
        %v654 = vunpack.c.l.b16 %v630
        %v655 = vunpack.c.l.b16 %v631
        %v656 = vunpack.c.l.b16 %v632
        %v657 = vpack.c.b16 %v646, %v645
        %v658 = vpack.c.b16 %v648, %v647
        %v659 = vpack.c.b16 %v650, %v649
        %v660 = vpack.c.b16 %v652, %v651
        %v661 = vpack.c.b16 %v654, %v653
        %v662 = vpack.c.b16 %v656, %v655
        %669 = vmatprep.subr.bf16.mxu0 %v465
        %670 = vmatpush1.bf16.msra.mxu0 %v464
        %671 = vmatprep.subr.bf16.mxu0 %v467
        %672 = vmatpush1.bf16.msra.mxu0 %v466
        %673 = vmatprep.subr.bf16.mxu0 %v469
        %674 = vmatpush1.bf16.msra.mxu0 %v468
        %675 = vmatprep.subr.bf16.mxu0 %v471
        %676 = vmatpush1.bf16.msra.mxu0 %v470
        %677 = vmatprep.subr.bf16.mxu0 %v473
        %678 = vmatpush1.bf16.msra.mxu0 %v472
        %679 = vmatprep.subr.bf16.mxu0 %v475
        %680 = vmatpush1.bf16.msra.mxu0 %v474
        %681 = vmatprep.subr.bf16.mxu0 %v477
        %682 = vmatpush1.bf16.msra.mxu0 %v476
        %683 = vmatprep.subr.bf16.mxu0 %v479
        %684 = vmatpush1.bf16.msra.mxu0 %v478
        %685 = vmatprep.subr.bf16.mxu0 0
        %686 = vmatpush1.bf16.msra.mxu0 0
        %687 = vmatprep.subr.bf16.mxu0 0
        %688 = vmatpush1.bf16.msra.mxu0 0
        %689 = vmatprep.subr.bf16.mxu0 0
        %690 = vmatpush1.bf16.msra.mxu0 0
        %691 = vmatprep.subr.bf16.mxu0 0
        %692 = vmatpush1.bf16.msra.mxu0 0
        %693 = vmatprep.subr.bf16.mxu0 0
        %694 = vmatpush1.bf16.msra.mxu0 0
        %695 = vmatprep.subr.bf16.mxu0 0
        %696 = vmatpush1.bf16.msra.mxu0 0
        %697 = vmatprep.subr.bf16.mxu0 0
        %698 = vmatpush1.bf16.msra.mxu0 0
        %699 = vmatprep.subr.bf16.mxu0 0
        %700 = vmatpush1.bf16.msra.mxu0 0
        %701 = vmatprep.mubr.bf16.mxu0 0
        %702 = vmatmul.mubr.bf16.gmra.mrb[0].mxu0 %v657
        %v703 = vpop.f32.mrb[0].mxu0
        %v704 = vadd.f32 0.0, %v703
        %v705 = vpop.f32.mrb[0].mxu0
        %v706 = vadd.f32 0.0, %v705
        %v707 = vpop.f32.mrb[0].mxu0
        %v708 = vadd.f32 0.0, %v707
        %v709 = vpop.f32.mrb[0].mxu0
        %v710 = vadd.f32 0.0, %v709
        %711 = vmatprep.mubr.bf16.mxu0 0
        %712 = vmatmul.mubr.bf16.gmra.mrb[0].mxu0 %v658
        %v713 = vpop.f32.mrb[0].mxu0
        %v714 = vadd.f32 0.0, %v713
        %v715 = vpop.f32.mrb[0].mxu0
        %v716 = vadd.f32 0.0, %v715
        %v717 = vpop.f32.mrb[0].mxu0
        %v718 = vadd.f32 0.0, %v717
        %v719 = vpop.f32.mrb[0].mxu0
        %v720 = vadd.f32 0.0, %v719
        %721 = vmatprep.mubr.bf16.mxu0 0
        %722 = vmatmul.mubr.bf16.gmra.mrb[0].mxu0 %v659
        %v723 = vpop.f32.mrb[0].mxu0
        %v724 = vadd.f32 0.0, %v723
        %v725 = vpop.f32.mrb[0].mxu0
        %v726 = vadd.f32 0.0, %v725
        %v727 = vpop.f32.mrb[0].mxu0
        %v728 = vadd.f32 0.0, %v727
        %v729 = vpop.f32.mrb[0].mxu0
        %v730 = vadd.f32 0.0, %v729
        %731 = vmatprep.mubr.bf16.mxu0 0
        %732 = vmatmul.mubr.bf16.gmra.mrb[0].mxu0 %v660
        %v733 = vpop.f32.mrb[0].mxu0
        %v734 = vadd.f32 0.0, %v733
        %v735 = vpop.f32.mrb[0].mxu0
        %v736 = vadd.f32 0.0, %v735
        %v737 = vpop.f32.mrb[0].mxu0
        %v738 = vadd.f32 0.0, %v737
        %v739 = vpop.f32.mrb[0].mxu0
        %v740 = vadd.f32 0.0, %v739
        %741 = vmatprep.mubr.bf16.mxu0 0
        %742 = vmatmul.mubr.bf16.gmra.mrb[0].mxu0 %v661
        %v743 = vpop.f32.mrb[0].mxu0
        %v744 = vadd.f32 0.0, %v743
        %v745 = vpop.f32.mrb[0].mxu0
        %v746 = vadd.f32 0.0, %v745
        %v747 = vpop.f32.mrb[0].mxu0
        %v748 = vadd.f32 0.0, %v747
        %v749 = vpop.f32.mrb[0].mxu0
        %v750 = vadd.f32 0.0, %v749
        %751 = vmatprep.mubr.bf16.mxu0 0
        %752 = vmatmul.mubr.bf16.gmra.mrb[0].mxu0 %v662
        %v753 = vpop.f32.mrb[0].mxu0
        %v754 = vadd.f32 0.0, %v753
        %v755 = vpop.f32.mrb[0].mxu0
        %v756 = vadd.f32 0.0, %v755
        %v757 = vpop.f32.mrb[0].mxu0
        %v758 = vadd.f32 0.0, %v757
        %v759 = vpop.f32.mrb[0].mxu0
        %v760 = vadd.f32 0.0, %v759
        %761 = vdwg.mxu0
        %v762 = vadd.f32 %v563, %v593
        %v763 = vadd.f32 %v565, %v595
        %v764 = vadd.f32 %v567, %v597
        %v765 = vadd.f32 %v569, %v599
        %v766 = vadd.f32 %v573, %v603
        %v767 = vadd.f32 %v575, %v605
        %v768 = vadd.f32 %v577, %v607
        %v769 = vadd.f32 %v579, %v609
        %v770 = vadd.f32 %v583, %v613
        %v771 = vadd.f32 %v585, %v615
        %v772 = vadd.f32 %v587, %v617
        %v773 = vadd.f32 %v589, %v619
        %v774 = vadd.f32 %v704, %v734
        %v775 = vadd.f32 %v706, %v736
        %v776 = vadd.f32 %v708, %v738
        %v777 = vadd.f32 %v710, %v740
        %v778 = vadd.f32 %v714, %v744
        %v779 = vadd.f32 %v716, %v746
        %v780 = vadd.f32 %v718, %v748
        %v781 = vadd.f32 %v720, %v750
        %v782 = vadd.f32 %v724, %v754
        %v783 = vadd.f32 %v726, %v756
        %v784 = vadd.f32 %v728, %v758
        %v785 = vadd.f32 %v730, %v760
        %v786 = vmul.f32 %v762, %v774
        %v787 = vmul.f32 %v763, %v775
        %v788 = vmul.f32 %v764, %v776
        %v789 = vmul.f32 %v765, %v777
        %v790 = vmul.f32 %v766, %v778
        %v791 = vmul.f32 %v767, %v779
        %v792 = vmul.f32 %v768, %v780
        %v793 = vmul.f32 %v769, %v781
        %v794 = vmul.f32 %v770, %v782
        %v795 = vmul.f32 %v771, %v783
        %v796 = vmul.f32 %v772, %v784
        %v797 = vmul.f32 %v773, %v785
        %v798 = vadd.f32 %v786, %v788
        %v799 = vadd.f32 %v798, %v790
        %v800 = vadd.f32 %v799, %v792
        %v801 = vadd.f32 %v800, %v794
        %v802 = vadd.f32 %v801, %v796
        %v803 = vrot.slane %v802, 4
        %v804 = vadd.f32 %v802, %v803
        %v805 = vrot.slane %v804, 2
        %v806 = vadd.f32 %v804, %v805
        %v807 = vrot.slane %v806, 1
        %v808 = vadd.f32 %v806, %v807
        %v809 = vadd.f32 %v787, %v789
        %v810 = vadd.f32 %v809, %v791
        %v811 = vadd.f32 %v810, %v793
        %v812 = vadd.f32 %v811, %v795
        %v813 = vadd.f32 %v812, %v797
        %v814 = vrot.slane %v813, 4
        %v815 = vadd.f32 %v813, %v814
        %v816 = vrot.slane %v815, 2
        %v817 = vadd.f32 %v815, %v816
        %v818 = vrot.slane %v817, 1
        %v819 = vadd.f32 %v817, %v818
        %v822 = vcombine.low %v808, %v819
        %v824 = vunpack.c.l.s4 1966171168
        %v825 = vunpack.c.0.s8 %v824
        %v826 = vlaneseq
        %v827 = vshrl.u32 %v826, 7
        %v828 = vsub.s32 %v825, %v827
        %v829 = vrot.slane %v822, %v828
        %v831 = vunpack.c.l.s4 1966171168
        %v832 = vunpack.c.0.s8 %v831
        %v833 = vlaneseq
        %v834 = vshrl.u32 %v833, 7
        %v835 = vsub.s32 %v832, %v834
        %v836 = vrot.slane %v829, %v835
        %v838 = vlaneseq
        %vm839 = vcmp.ge.s32.totalorder %v838, 0
        %vm840 = vcmp.lt.s32.totalorder %v838, 256
        %vm841 = vmand %vm839, %vm840
        %842 = vst.msk [vmem:[%s280] sm:$0x3] %vm841, %v836
        %s843 = sand.u32 %s127, 1
        %s844 = scalar_lea.sflag [#allocation4], %s843
        %s845 = sand.u32 %s127, 1
        %s846 = smul.addr %s845, 2
        %s847 = scalar_lea.vmem [#allocation10], %s846
        // Predicated region
        $region53: #{tpu_custom_call.1} parent=35 // pred_check
          %p848 = pneg %p137
        $region54: #{tpu_custom_call.1} parent=35 // pred_check_branch
          %850 = sbr.rel (%p848) target = $region56
        $region55: #{tpu_custom_call.1} parent=35 // pred_region
          %s851 = smul.u32 2, %s25
          %s853 = ssub.s32 32, 32
          %854 = vsyncadd %s844, %s853
          %s855 = smul.addr %s851, 16
          %s856 = scalar_lea.hbm %s4, %s855
          %s858 = sshll.u32 %s847, 4
          %s859 = int_to_ptr.vmem [resolvable:$true] %s858
          %861 = dma.vmem_to_hbm [thread:$0]  %s859, 32, %s856, %s844
        $region56: #{tpu_custom_call.1} parent=35 // pred_fallthru
          _
      $region36: #{tpu_custom_call.1} parent=5 // pred_fallthru
        _
      %p862 = scmp.le.s32.totalorder 2, %s20
      // Predicated region
      $region57: #{tpu_custom_call.1} parent=5 // pred_check
        %p863 = pneg %p862
      $region58: #{tpu_custom_call.1} parent=5 // pred_check_branch
        %865 = sbr.rel (%p863) target = $region60
      $region59: #{tpu_custom_call.1} parent=5 // pred_region
        %s866 = ssub.s32 %s20, 2
        // Predicated region
        $region61: #{tpu_custom_call.1} parent=59 // pred_check
          %p867 = pneg %p143
        $region62: #{tpu_custom_call.1} parent=59 // pred_check_branch
          %869 = sbr.rel (%p867) target = $region64
        $region63: #{tpu_custom_call.1} parent=59 // pred_region
          %s870 = sand.u32 %s128, 1
          %s871 = scalar_lea.sflag [#allocation4], %s870
          %s872 = sand.u32 %s128, 1
          %s873 = smul.addr %s872, 2
          %s874 = scalar_lea.vmem [#allocation10], %s873
          %875 = dma.done %s871, 32
        $region64: #{tpu_custom_call.1} parent=59 // pred_fallthru
          _
      $region60: #{tpu_custom_call.1} parent=5 // pred_fallthru
        _
    $region6: #{tpu_custom_call.1} parent=1 // loop_footer
      %s24 = sadd.s32 1, %s20
    $region7: #{tpu_custom_call.1} parent=1 // loop_footer_branch
      %19 = sbr.rel target = $region3
    $region8: #{tpu_custom_call.1} parent=1 // loop_exit
      _
    %876 = vsyncpa [#allocation3], 1
    %s877 = scalar_lea.sflag [#allocation3], 1
    %878 = vsyncpa %s877, 1
    %879 = vsyncpa [#allocation6], 1
    %s880 = scalar_lea.sflag [#allocation6], 1
    %881 = vsyncpa %s880, 1
    %882 = vsyncpa [#allocation9], 1
    %883 = vsyncpa [#allocation4], 1
    %s884 = scalar_lea.sflag [#allocation4], 1
    %885 = vsyncpa %s884, 1

</llo_original>
